<compile_context>
chip_gen: v7x
topology: tpu7x:2x2x1
jax: 0.10.0
libtpu: 0.0.40
codegen_flags: <defaults>
</compile_context>

<pallas_src>
import functools
import math
import re

import jax
import jax.numpy as jnp
from jax import lax
from jax.experimental import pallas as pl
from jax.experimental.pallas import tpu as pltpu


def _round_up(n, m):
    return ((n + m - 1) // m) * m


def _bf16_compute_supported():
    """bf16 VPU/EUP (fast bf16 tanh/sin) exists on v6e / v7x TensorCores, not
    on v5e or older. Detection via device_kind; defaults to the safe f32 path."""
    try:
        kind = jax.devices()[0].device_kind.lower()
    except Exception:
        return False
    nums = re.findall(r"\d+", kind)
    return any(int(n) >= 6 for n in nums)


def _network_kernel(x_ref, wf_ref, bf_ref, w1_ref, b1_ref, w2_ref, b2_ref,
                    wl_ref, bl_ref, bound_ref, out_ref, *, depth, penalty,
                    activation, compute_dtype):
    cdt = compute_dtype
    sin_path = activation.lower() == "sin"

    # Hoist all weight / bias loads out of the depth loop (JAX does not CSE
    # repeated Ref loads / broadcasts inside an unrolled loop).
    x = x_ref[...]            # [inputs, TILE_B]  f32 (kept f32; no wrapper cast)
    wf = wf_ref[...]          # [W, inputs]       f32
    bf = bf_ref[...]          # [W, 1]            f32
    w1 = w1_ref[...]          # [W, W]            compute_dtype  (Block.L1)
    b1 = b1_ref[...]          # [W, 1]            f32
    w2 = w2_ref[...]          # [W, W]            compute_dtype  (Block.L2)
    b2 = b2_ref[...]          # [W, 1]            f32

    inputs = x.shape[0]

    # First linear, feature-major: h = Wf @ x + bf  ->  [W, TILE_B] f32.
    # K = inputs is tiny in the Merton setting; for inputs <= 8 skip the MXU
    # (K uses <4% of the contraction dim and puts an MXU push/pop at the head
    # of every grid step) and use lane-broadcast multiply-adds on idle VPU
    # slots instead. Input precision is preserved (everything here is f32).
    if inputs <= 8:
        h = wf[:, 0:1] * x[0:1, :]
        for i in range(1, inputs):
            h = h + wf[:, i:i + 1] * x[i:i + 1, :]
        h = h + bf
    else:
        h = jnp.dot(wf, x, preferred_element_type=jnp.float32) + bf

    def act(z):
        # EUP activation in the compute dtype: bf16 tanh/sin runs ~2x on
        # v6e/v7x. With cdt == f32 the astype is a no-op. The result is fed
        # straight into the next matmul (no extra cast needed).
        z = z.astype(cdt)
        return jnp.sin(z) if sin_path else jnp.tanh(z)

    def block(hh):
        # Tanh path: tanh(L1(tanh(L2(h)))) + h   (L2 applied first)
        # Sin  path: sin (L2(sin (L1(h)))) + h   (L1 applied first)
        wa, ba, wb, bb = (w1, b1, w2, b2) if sin_path else (w2, b2, w1, b1)
        t = act(jnp.dot(wa, hh.astype(cdt),
                        preferred_element_type=jnp.float32) + ba)
        u = act(jnp.dot(wb, t, preferred_element_type=jnp.float32) + bb)
        return u.astype(jnp.float32) + hh        # residual add kept in f32

    if depth <= 4:
        # small depth: full unroll keeps LLO scheduling visibility
        for _ in range(depth):
            h = block(h)
    else:
        # larger depth: bounded unroll caps code size and the residual `hh`
        # live range (the main vreg-pressure term at large TILE_B) while
        # keeping scheduling visibility inside each chunk.
        h = lax.fori_loop(0, depth, lambda _, hh: block(hh), h, unroll=2)

    wl = wl_ref[...]          # [W, output] f32 (last weight, transposed)
    bl = bl_ref[...]          # [output, 1] f32
    if wl.shape[1] == 1:
        # output==1 head: VPU multiply + sublane (XLU) reduce, no M=1 MXU pass.
        y = jnp.sum(h * wl, axis=0, keepdims=True) + bl        # [1, TILE_B]
    else:
        y = jnp.einsum("wo,wb->ob", wl, h,
                       preferred_element_type=jnp.float32) + bl

    if penalty == "Tanh":
        y = jnp.tanh(y) * bound_ref[0]
    elif penalty == "Sigmoid":
        y = jax.nn.sigmoid(y) * bound_ref[0]
    # penalty=None -> raw network output

    out_ref[...] = y.astype(out_ref.dtype)


def network_forward(x, params, *, depth, penalty="Tanh", activation="Tanh",
                    tile_b=1024, compute_dtype=jnp.float32):
    """x: [batch, inputs] f32. params: PyTorch-oriented weights ([out, in]) and
    column biases ([out, 1]). Returns [batch, output] f32."""
    batch, inputs = x.shape
    width = params["w1"].shape[0]
    output = params["wl"].shape[0]

    # v5e gate: no bf16 VPU/EUP there -> bf16 casts are pure overhead; fall
    # back to the exact f32 path.
    if compute_dtype != jnp.float32 and not _bf16_compute_supported():
        compute_dtype = jnp.float32

    # Batch lives on the 128 lanes -> tile must be a multiple of 128. Big
    # tiles amortize the per-grid-step overhead; with W=32 the resident set is
    # far below any VMEM limit, so 1024/2048 is safe (sweep on target chip).
    tile_b = min(tile_b, _round_up(batch, 128))
    tile_b = max(128, _round_up(tile_b, 128))
    # Keep >= 2 grid steps whenever the batch allows it so the "parallel"
    # batch axis actually shards across v7x's two TensorCores / megacore.
    if batch >= 256:
        tile_b = min(tile_b, _round_up((batch + 1) // 2, 128))
    padded = _round_up(batch, tile_b)
    grid = (padded // tile_b,)

    # Feature-major layout: x_T is [inputs, padded_batch]. x stays f32 at the
    # pallas_call boundary (no wrapper-side dtype-cast HBM pass).
    x_t = x.T
    if padded != batch:
        x_t = jnp.pad(x_t, ((0, 0), (0, padded - batch)))

    # Only the W x W block weights are cast to the compute dtype; the first
    # layer (K = inputs, tiny), last-layer column and all biases stay f32.
    w1 = params["w1"].astype(compute_dtype)     # Block.L1 [W, W]
    w2 = params["w2"].astype(compute_dtype)     # Block.L2 [W, W]
    wf = params["wf"]                           # [W, inputs] f32
    wl_col = params["wl"].T                     # [W, output] f32
    bf, b1, b2, bl = params["bf"], params["b1"], params["b2"], params["bl"]
    bound = params["bound"]                     # [1] f32 scalar (SMEM)

    kernel = functools.partial(_network_kernel, depth=depth, penalty=penalty,
                               activation=activation,
                               compute_dtype=compute_dtype)

    const = lambda i: (0, 0)                    # weights: resident across grid

    def weight_spec(shape):
        # Constant-index blocks still get 2 pipeline buffers by default; for
        # very wide configs single-buffer them so weight VMEM does not trade
        # against tile_b on v7x (64 MiB physical VMEM).
        if width >= 512:
            return pl.BlockSpec(shape, const, pipeline_mode=pl.Buffered(1))
        return pl.BlockSpec(shape, const)

    wbytes = jnp.dtype(compute_dtype).itemsize
    flops = 2 * batch * (inputs * width + 2 * depth * width * width
                         + width * output)
    transcendentals = batch * (2 * depth * width
                               + (output if penalty in ("Tanh", "Sigmoid") else 0))
    bytes_accessed = (batch * (inputs + output) * 4
                      + width * inputs * 4 + 2 * width * width * wbytes
                      + (width * output + 3 * width + output + 1) * 4)

    out_t = pl.pallas_call(
        kernel,
        out_shape=jax.ShapeDtypeStruct((output, padded), jnp.float32),
        grid=grid,
        in_specs=[
            pl.BlockSpec((inputs, tile_b), lambda i: (0, i)),   # x_T tile
            weight_spec((width, inputs)),                       # Wf
            weight_spec((width, 1)),                            # bf
            weight_spec((width, width)),                        # Block.L1 W
            weight_spec((width, 1)),                            # Block.L1 b
            weight_spec((width, width)),                        # Block.L2 W
            weight_spec((width, 1)),                            # Block.L2 b
            weight_spec((width, output)),                       # Wl^T column(s)
            weight_spec((output, 1)),                           # bl
            pl.BlockSpec(memory_space=pltpu.MemorySpace.SMEM),  # bound scalar
        ],
        out_specs=pl.BlockSpec((output, tile_b), lambda i: (0, i)),
        compiler_params=pltpu.CompilerParams(
            dimension_semantics=("parallel",)),
        cost_estimate=pl.CostEstimate(flops=int(flops),
                                      transcendentals=int(transcendentals),
                                      bytes_accessed=int(bytes_accessed)),
    )(x_t, wf, bf, w1, b1, w2, b2, wl_col, bl, bound)

    # back to user-facing [batch, output]
    return out_t[:, :batch].T


def init_params(key, inputs, width, output):
    """Deterministic init mimicking nn.Linear's U(-1/sqrt(fan_in), +1/sqrt(fan_in)).
    Weights stored in PyTorch orientation [out_features, in_features];
    biases as columns [out_features, 1]."""
    def linear(k, fan_in, fan_out):
        kw, kb = jax.random.split(k)
        lim = 1.0 / math.sqrt(fan_in)
        w = jax.random.uniform(kw, (fan_out, fan_in), jnp.float32, -lim, lim)
        b = jax.random.uniform(kb, (fan_out, 1), jnp.float32, -lim, lim)
        return w, b

    k_first, k_l1, k_l2, k_last = jax.random.split(key, 4)
    wf, bf = linear(k_first, inputs, width)
    w1, b1 = linear(k_l1, width, width)      # Block.L1 (shared across depth)
    w2, b2 = linear(k_l2, width, width)      # Block.L2 (shared across depth)
    wl, bl = linear(k_last, width, output)
    bound = jnp.ones((1,), dtype=jnp.float32)   # nn.Parameter(torch.tensor(1.0))
    return dict(wf=wf, bf=bf, w1=w1, b1=b1, w2=w2, b2=b2, wl=wl, bl=bl,
                bound=bound)


def reference_forward(x, p, *, depth, penalty="Tanh", activation="Tanh"):
    sin_path = activation.lower() == "sin"
    act = jnp.sin if sin_path else jnp.tanh
    h = x @ p["wf"].T + p["bf"].T
    for _ in range(depth):
        if sin_path:
            t = act(h @ p["w1"].T + p["b1"].T)   # L1 first, as in Block.forward
            h = act(t @ p["w2"].T + p["b2"].T) + h
        else:
            t = act(h @ p["w2"].T + p["b2"].T)   # L2 first, as in Block.forward
            h = act(t @ p["w1"].T + p["b1"].T) + h
    y = h @ p["wl"].T + p["bl"].T
    if penalty == "Tanh":
        y = jnp.tanh(y) * p["bound"][0]
    elif penalty == "Sigmoid":
        y = jax.nn.sigmoid(y) * p["bound"][0]
    return y


if __name__ == "__main__":
    # Merton-problem-sized toy config: inputs=(t, wealth, ...) -> scalar value fn.
    batch, inputs, width, depth, output = 8, 4, 32, 3, 1
    penalty = "Tanh"

    key = jax.random.PRNGKey(0)
    k_params, k_x, k_xb = jax.random.split(key, 3)
    params = init_params(k_params, inputs, width, output)
    x = jax.random.normal(k_x, (batch, inputs), dtype=jnp.float32)

    # f32 Tanh path (bit-compatible with the reference; the only path on v5e)
    ref = reference_forward(x, params, depth=depth, penalty=penalty)
    out = jax.block_until_ready(
        network_forward(x, params, depth=depth, penalty=penalty))
    assert out.shape == (batch, output)
    assert jnp.allclose(out, ref, atol=1e-5, rtol=1e-5), "f32 mismatch vs reference"

    # Sin activation path of Block: sin(L2(sin(L1(x)))) + x
    ref_sin = reference_forward(x, params, depth=depth, penalty=penalty,
                                activation="Sin")
    out_sin = jax.block_until_ready(
        network_forward(x, params, depth=depth, penalty=penalty,
                        activation="Sin"))
    assert jnp.allclose(out_sin, ref_sin, atol=1e-5, rtol=1e-5), "sin mismatch"

    # Multi-step grid (padding + >=2 tiles -> exercises v7x 2-TC sharding) and
    # the depth>4 bounded-unroll fori_loop path.
    xb = jax.random.normal(k_xb, (300, inputs), dtype=jnp.float32)
    ref_b = reference_forward(xb, params, depth=6, penalty=penalty)
    out_b = jax.block_until_ready(
        network_forward(xb, params, depth=6, penalty=penalty))
    assert out_b.shape == (300, output)
    assert jnp.allclose(out_b, ref_b, atol=1e-5, rtol=1e-5), "multi-tile mismatch"

    # bf16 compute path (bf16 W x W matmuls + bf16 EUP tanh; v6e/v7x only —
    # automatically gated back to f32 on chips without bf16 VPU/EUP).
    if _bf16_compute_supported():
        # TODO(synk): quantify bf16(-tanh) error at production widths/depths
        # before enabling this path in a downstream solver.
        out_bf16 = jax.block_until_ready(
            network_forward(x, params, depth=depth, penalty=penalty,
                            compute_dtype=jnp.bfloat16))
        assert jnp.allclose(out_bf16, ref, atol=1e-1, rtol=1e-1), \
            "bf16 mismatch vs reference"

    print("KERNEL_OK")
</pallas_src>

<mosaic_0001>
module attributes {stable_mosaic.version = 11 : i64} {
  func.func @_network_kernel(%arg0: i32, %arg1: memref<4x128xf32, #tpu.memory_space<vmem>>, %arg2: memref<32x4xf32, #tpu.memory_space<vmem>>, %arg3: memref<32x1xf32, #tpu.memory_space<vmem>>, %arg4: memref<32x32xf32, #tpu.memory_space<vmem>>, %arg5: memref<32x1xf32, #tpu.memory_space<vmem>>, %arg6: memref<32x32xf32, #tpu.memory_space<vmem>>, %arg7: memref<32x1xf32, #tpu.memory_space<vmem>>, %arg8: memref<32x1xf32, #tpu.memory_space<vmem>>, %arg9: memref<1x1xf32, #tpu.memory_space<vmem>>, %arg10: memref<1xf32, #tpu.memory_space<smem>>, %arg11: memref<1x128xf32, #tpu.memory_space<vmem>>) attributes {dimension_semantics = [#tpu.dimension_semantics<parallel>], iteration_bounds = array<i64: 1>, scalar_prefetch = 0 : i64, scratch_operands = 0 : i64, tpu.core_type = #tpu.core_type<tc>, window_params = [{transform_indices = @transform_0, window_bounds = array<i64: 4, 128>}, {pipeline_mode = #tpu.pipeline_mode<synchronous>, transform_indices = @transform_1, window_bounds = array<i64: 32, 4>}, {pipeline_mode = #tpu.pipeline_mode<synchronous>, transform_indices = @transform_2, window_bounds = array<i64: 32, 1>}, {pipeline_mode = #tpu.pipeline_mode<synchronous>, transform_indices = @transform_3, window_bounds = array<i64: 32, 32>}, {pipeline_mode = #tpu.pipeline_mode<synchronous>, transform_indices = @transform_4, window_bounds = array<i64: 32, 1>}, {pipeline_mode = #tpu.pipeline_mode<synchronous>, transform_indices = @transform_5, window_bounds = array<i64: 32, 32>}, {pipeline_mode = #tpu.pipeline_mode<synchronous>, transform_indices = @transform_6, window_bounds = array<i64: 32, 1>}, {pipeline_mode = #tpu.pipeline_mode<synchronous>, transform_indices = @transform_7, window_bounds = array<i64: 32, 1>}, {pipeline_mode = #tpu.pipeline_mode<synchronous>, transform_indices = @transform_8, window_bounds = array<i64: 1, 1>}, {transform_indices = @transform_9, window_bounds = array<i64: 1>}, {transform_indices = @transform_10, window_bounds = array<i64: 1, 128>}]} {
    %c0 = arith.constant 0 : index
    %c0_0 = arith.constant 0 : index
    %0 = vector.load %arg1[%c0, %c0_0] : memref<4x128xf32, #tpu.memory_space<vmem>>, vector<4x128xf32>
    %c0_1 = arith.constant 0 : index
    %c0_2 = arith.constant 0 : index
    %1 = vector.load %arg2[%c0_1, %c0_2] : memref<32x4xf32, #tpu.memory_space<vmem>>, vector<32x4xf32>
    %c0_3 = arith.constant 0 : index
    %c0_4 = arith.constant 0 : index
    %2 = vector.load %arg3[%c0_3, %c0_4] : memref<32x1xf32, #tpu.memory_space<vmem>>, vector<32x1xf32>
    %c0_5 = arith.constant 0 : index
    %c0_6 = arith.constant 0 : index
    %3 = vector.load %arg4[%c0_5, %c0_6] : memref<32x32xf32, #tpu.memory_space<vmem>>, vector<32x32xf32>
    %c0_7 = arith.constant 0 : index
    %c0_8 = arith.constant 0 : index
    %4 = vector.load %arg5[%c0_7, %c0_8] : memref<32x1xf32, #tpu.memory_space<vmem>>, vector<32x1xf32>
    %c0_9 = arith.constant 0 : index
    %c0_10 = arith.constant 0 : index
    %5 = vector.load %arg6[%c0_9, %c0_10] : memref<32x32xf32, #tpu.memory_space<vmem>>, vector<32x32xf32>
    %c0_11 = arith.constant 0 : index
    %c0_12 = arith.constant 0 : index
    %6 = vector.load %arg7[%c0_11, %c0_12] : memref<32x1xf32, #tpu.memory_space<vmem>>, vector<32x1xf32>
    %7 = vector.extract_strided_slice %1 {offsets = [0, 0], sizes = [32, 1], strides = [1, 1]} : vector<32x4xf32> to vector<32x1xf32>
    %8 = vector.extract_strided_slice %0 {offsets = [0, 0], sizes = [1, 128], strides = [1, 1]} : vector<4x128xf32> to vector<1x128xf32>
    %9 = vector.broadcast %7 : vector<32x1xf32> to vector<32x128xf32>
    %10 = vector.broadcast %8 : vector<1x128xf32> to vector<32x128xf32>
    %11 = arith.mulf %9, %10 : vector<32x128xf32>
    %12 = vector.extract_strided_slice %1 {offsets = [0, 1], sizes = [32, 1], strides = [1, 1]} : vector<32x4xf32> to vector<32x1xf32>
    %13 = vector.extract_strided_slice %0 {offsets = [1, 0], sizes = [1, 128], strides = [1, 1]} : vector<4x128xf32> to vector<1x128xf32>
    %14 = vector.broadcast %12 : vector<32x1xf32> to vector<32x128xf32>
    %15 = vector.broadcast %13 : vector<1x128xf32> to vector<32x128xf32>
    %16 = arith.mulf %14, %15 : vector<32x128xf32>
    %17 = arith.addf %11, %16 : vector<32x128xf32>
    %18 = vector.extract_strided_slice %1 {offsets = [0, 2], sizes = [32, 1], strides = [1, 1]} : vector<32x4xf32> to vector<32x1xf32>
    %19 = vector.extract_strided_slice %0 {offsets = [2, 0], sizes = [1, 128], strides = [1, 1]} : vector<4x128xf32> to vector<1x128xf32>
    %20 = vector.broadcast %18 : vector<32x1xf32> to vector<32x128xf32>
    %21 = vector.broadcast %19 : vector<1x128xf32> to vector<32x128xf32>
    %22 = arith.mulf %20, %21 : vector<32x128xf32>
    %23 = arith.addf %17, %22 : vector<32x128xf32>
    %24 = vector.extract_strided_slice %1 {offsets = [0, 3], sizes = [32, 1], strides = [1, 1]} : vector<32x4xf32> to vector<32x1xf32>
    %25 = vector.extract_strided_slice %0 {offsets = [3, 0], sizes = [1, 128], strides = [1, 1]} : vector<4x128xf32> to vector<1x128xf32>
    %26 = vector.broadcast %24 : vector<32x1xf32> to vector<32x128xf32>
    %27 = vector.broadcast %25 : vector<1x128xf32> to vector<32x128xf32>
    %28 = arith.mulf %26, %27 : vector<32x128xf32>
    %29 = arith.addf %23, %28 : vector<32x128xf32>
    %30 = vector.broadcast %2 : vector<32x1xf32> to vector<32x128xf32>
    %31 = arith.addf %29, %30 : vector<32x128xf32>
    %cst = arith.constant dense<0.000000e+00> : vector<32x128xf32>
    %32 = tpu.matmul %5, %31, %cst {dimension_numbers = #tpu.dot_dimension_numbers<[1], [0], [0], [1], [0, 0, 1, 1], [], []>} : vector<32x32xf32>, vector<32x128xf32>, vector<32x128xf32> -> vector<32x128xf32>
    %33 = vector.broadcast %6 : vector<32x1xf32> to vector<32x128xf32>
    %34 = arith.addf %32, %33 : vector<32x128xf32>
    %35 = math.tanh %34 : vector<32x128xf32>
    %cst_13 = arith.constant dense<0.000000e+00> : vector<32x128xf32>
    %36 = tpu.matmul %3, %35, %cst_13 {dimension_numbers = #tpu.dot_dimension_numbers<[1], [0], [0], [1], [0, 0, 1, 1], [], []>} : vector<32x32xf32>, vector<32x128xf32>, vector<32x128xf32> -> vector<32x128xf32>
    %37 = vector.broadcast %4 : vector<32x1xf32> to vector<32x128xf32>
    %38 = arith.addf %36, %37 : vector<32x128xf32>
    %39 = math.tanh %38 : vector<32x128xf32>
    %40 = arith.addf %39, %31 : vector<32x128xf32>
    %cst_14 = arith.constant dense<0.000000e+00> : vector<32x128xf32>
    %41 = tpu.matmul %5, %40, %cst_14 {dimension_numbers = #tpu.dot_dimension_numbers<[1], [0], [0], [1], [0, 0, 1, 1], [], []>} : vector<32x32xf32>, vector<32x128xf32>, vector<32x128xf32> -> vector<32x128xf32>
    %42 = vector.broadcast %6 : vector<32x1xf32> to vector<32x128xf32>
    %43 = arith.addf %41, %42 : vector<32x128xf32>
    %44 = math.tanh %43 : vector<32x128xf32>
    %cst_15 = arith.constant dense<0.000000e+00> : vector<32x128xf32>
    %45 = tpu.matmul %3, %44, %cst_15 {dimension_numbers = #tpu.dot_dimension_numbers<[1], [0], [0], [1], [0, 0, 1, 1], [], []>} : vector<32x32xf32>, vector<32x128xf32>, vector<32x128xf32> -> vector<32x128xf32>
    %46 = vector.broadcast %4 : vector<32x1xf32> to vector<32x128xf32>
    %47 = arith.addf %45, %46 : vector<32x128xf32>
    %48 = math.tanh %47 : vector<32x128xf32>
    %49 = arith.addf %48, %40 : vector<32x128xf32>
    %cst_16 = arith.constant dense<0.000000e+00> : vector<32x128xf32>
    %50 = tpu.matmul %5, %49, %cst_16 {dimension_numbers = #tpu.dot_dimension_numbers<[1], [0], [0], [1], [0, 0, 1, 1], [], []>} : vector<32x32xf32>, vector<32x128xf32>, vector<32x128xf32> -> vector<32x128xf32>
    %51 = vector.broadcast %6 : vector<32x1xf32> to vector<32x128xf32>
    %52 = arith.addf %50, %51 : vector<32x128xf32>
    %53 = math.tanh %52 : vector<32x128xf32>
    %cst_17 = arith.constant dense<0.000000e+00> : vector<32x128xf32>
    %54 = tpu.matmul %3, %53, %cst_17 {dimension_numbers = #tpu.dot_dimension_numbers<[1], [0], [0], [1], [0, 0, 1, 1], [], []>} : vector<32x32xf32>, vector<32x128xf32>, vector<32x128xf32> -> vector<32x128xf32>
    %55 = vector.broadcast %4 : vector<32x1xf32> to vector<32x128xf32>
    %56 = arith.addf %54, %55 : vector<32x128xf32>
    %57 = math.tanh %56 : vector<32x128xf32>
    %58 = arith.addf %57, %49 : vector<32x128xf32>
    %c0_18 = arith.constant 0 : index
    %c0_19 = arith.constant 0 : index
    %59 = vector.load %arg8[%c0_18, %c0_19] : memref<32x1xf32, #tpu.memory_space<vmem>>, vector<32x1xf32>
    %c0_20 = arith.constant 0 : index
    %c0_21 = arith.constant 0 : index
    %60 = vector.load %arg9[%c0_20, %c0_21] : memref<1x1xf32, #tpu.memory_space<vmem>>, vector<1x1xf32>
    %61 = vector.broadcast %59 : vector<32x1xf32> to vector<32x128xf32>
    %62 = arith.mulf %58, %61 : vector<32x128xf32>
    %cst_22 = arith.constant dense<0.000000e+00> : vector<128xf32>
    %63 = vector.multi_reduction <add>, %62, %cst_22 [0] : vector<32x128xf32> to vector<128xf32>
    %64 = vector.shape_cast %63 : vector<128xf32> to vector<1x128xf32>
    %65 = vector.broadcast %60 : vector<1x1xf32> to vector<1x128xf32>
    %66 = arith.addf %64, %65 : vector<1x128xf32>
    %67 = math.tanh %66 : vector<1x128xf32>
    %c0_23 = arith.constant 0 : index
    %68 = memref.load %arg10[%c0_23] : memref<1xf32, #tpu.memory_space<smem>>
    %69 = vector.broadcast %68 : f32 to vector<1x128xf32>
    %70 = arith.mulf %67, %69 : vector<1x128xf32>
    %c0_24 = arith.constant 0 : index
    %c0_25 = arith.constant 0 : index
    %71 = vector.load %arg11[%c0_24, %c0_25] : memref<1x128xf32, #tpu.memory_space<vmem>>, vector<1x128xf32>
    tpu.vector_store %arg11[%c0_24, %c0_25], %70 {strides = array<i32>} : memref<1x128xf32, #tpu.memory_space<vmem>>, vector<1x128xf32>,
    return
  }
  func.func @transform_0(%arg0: i32) -> (i32, i32) {
    %c0_i32 = arith.constant 0 : i32
    %c0_i32_0 = arith.constant 0 : i32
    return %c0_i32, %arg0 : i32, i32
  }
  func.func @transform_1(%arg0: i32) -> (i32, i32) {
    %c0_i32 = arith.constant 0 : i32
    %c0_i32_0 = arith.constant 0 : i32
    %c0_i32_1 = arith.constant 0 : i32
    return %c0_i32, %c0_i32_0 : i32, i32
  }
  func.func @transform_2(%arg0: i32) -> (i32, i32) {
    %c0_i32 = arith.constant 0 : i32
    %c0_i32_0 = arith.constant 0 : i32
    %c0_i32_1 = arith.constant 0 : i32
    return %c0_i32, %c0_i32_0 : i32, i32
  }
  func.func @transform_3(%arg0: i32) -> (i32, i32) {
    %c0_i32 = arith.constant 0 : i32
    %c0_i32_0 = arith.constant 0 : i32
    %c0_i32_1 = arith.constant 0 : i32
    return %c0_i32, %c0_i32_0 : i32, i32
  }
  func.func @transform_4(%arg0: i32) -> (i32, i32) {
    %c0_i32 = arith.constant 0 : i32
    %c0_i32_0 = arith.constant 0 : i32
    %c0_i32_1 = arith.constant 0 : i32
    return %c0_i32, %c0_i32_0 : i32, i32
  }
  func.func @transform_5(%arg0: i32) -> (i32, i32) {
    %c0_i32 = arith.constant 0 : i32
    %c0_i32_0 = arith.constant 0 : i32
    %c0_i32_1 = arith.constant 0 : i32
    return %c0_i32, %c0_i32_0 : i32, i32
  }
  func.func @transform_6(%arg0: i32) -> (i32, i32) {
    %c0_i32 = arith.constant 0 : i32
    %c0_i32_0 = arith.constant 0 : i32
    %c0_i32_1 = arith.constant 0 : i32
    return %c0_i32, %c0_i32_0 : i32, i32
  }
  func.func @transform_7(%arg0: i32) -> (i32, i32) {
    %c0_i32 = arith.constant 0 : i32
    %c0_i32_0 = arith.constant 0 : i32
    %c0_i32_1 = arith.constant 0 : i32
    return %c0_i32, %c0_i32_0 : i32, i32
  }
  func.func @transform_8(%arg0: i32) -> (i32, i32) {
    %c0_i32 = arith.constant 0 : i32
    %c0_i32_0 = arith.constant 0 : i32
    %c0_i32_1 = arith.constant 0 : i32
    return %c0_i32, %c0_i32_0 : i32, i32
  }
  func.func @transform_9(%arg0: i32) -> i32 {
    %c0_i32 = arith.constant 0 : i32
    %c0_i32_0 = arith.constant 0 : i32
    return %c0_i32 : i32
  }
  func.func @transform_10(%arg0: i32) -> (i32, i32) {
    %c0_i32 = arith.constant 0 : i32
    %c0_i32_0 = arith.constant 0 : i32
    return %c0_i32, %arg0 : i32, i32
  }
}

</mosaic_0001>

<llo_original>
// kernel: tpu_custom_call.1
$region0: #{tpu_custom_call.1}
  #allocation0 [shape = 'u32[]', space=smem, size = 0x4, offset = 0x4, fixed_abs, tag = 'smem constant byte address 0x4 - core index']
  #allocation1 [shape = 'u32[144,128]{1,0:T(1,128)}', space=vmem, size = 0x12000, scoped, tag = 'internal scratch']
  #allocation2 [shape = 'f32[1,1]{1,0:T(1,128)S(1)}', space=vmem, size = 0x200, scoped, tag = 'scoped memory for tpu_custom_call.1']
  #allocation3 [shape = 'f32[1]{0:T(128)S(6)}', space=smem, size = 0x200, scoped, tag = 'scoped memory for tpu_custom_call.1']
  %s0 = inlined_call_operand.vmem [shape: f32[4,128], index: 0, kind: input, shape index: {}]
  %s1 = inlined_call_operand.vmem [shape: f32[32,4], index: 1, kind: input, shape index: {}]
  %s2 = inlined_call_operand.vmem [shape: f32[32,1], index: 2, kind: input, shape index: {}]
  %s3 = inlined_call_operand.vmem [shape: f32[32,32], index: 3, kind: input, shape index: {}]
  %s4 = inlined_call_operand.vmem [shape: f32[32,1], index: 4, kind: input, shape index: {}]
  %s5 = inlined_call_operand.vmem [shape: f32[32,32], index: 5, kind: input, shape index: {}]
  %s6 = inlined_call_operand.vmem [shape: f32[32,1], index: 6, kind: input, shape index: {}]
  %s7 = inlined_call_operand.vmem [shape: f32[32,1], index: 7, kind: input, shape index: {}]
  %s8 = inlined_call_operand.<no memory space> [shape: f32[1,1], index: 8, kind: input, shape index: {}]
  %s9 = inlined_call_operand.<no memory space> [shape: f32[1], index: 9, kind: input, shape index: {}]
  %s10 = inlined_call_operand.hbm [shape: f32[1,128], index: 10, kind: output, shape index: {}]
  %s11 = sld [smem:[#allocation0]]
  $region50: #{tpu_custom_call.1} parent=0
    _
  %s13 = ssub.s32 1, %s11
  %s14 = scalar_select 0, %s13, %s11
  %v15 = vstv %s8
  %16 = vst [vmem:[#allocation2] sm:$0x1] %v15
  %17 = sst [smem:[#allocation3]] %s9
  $region1: #{tpu_custom_call.1} parent=0
    #allocation4 [shape = 'u8[512]{0}', space=vmem, size = 0x400, scoped, tag = 'output window, operand 0, single buffered']
    #allocation5 [shape = 's32[1]{0}', space=sflag, size = 0x4, scoped, tag = 'scoped memory for tpu_custom_call.1']
    %18 = vsyncpa [#allocation5], 0
    // Predicated region
    $region2: #{tpu_custom_call.1} parent=1 // pred_check
      _
    $region3: #{tpu_custom_call.1} parent=1 // pred_check_branch
      %20 = sbr.rel (0) target = $region5
    $region4: #{tpu_custom_call.1} parent=1 // pred_region
      _
    $region5: #{tpu_custom_call.1} parent=1 // pred_fallthru
      _
    // Predicated region
    $region6: #{tpu_custom_call.1} parent=1 // pred_check
      _
    $region7: #{tpu_custom_call.1} parent=1 // pred_check_branch
      %22 = sbr.rel (0) target = $region9
    $region8: #{tpu_custom_call.1} parent=1 // pred_region
      _
    $region9: #{tpu_custom_call.1} parent=1 // pred_fallthru
      _
    // Predicated region
    $region10: #{tpu_custom_call.1} parent=1 // pred_check
      _
    $region11: #{tpu_custom_call.1} parent=1 // pred_check_branch
      %24 = sbr.rel (0) target = $region13
    $region12: #{tpu_custom_call.1} parent=1 // pred_region
      _
    $region13: #{tpu_custom_call.1} parent=1 // pred_fallthru
      _
    // Predicated region
    $region14: #{tpu_custom_call.1} parent=1 // pred_check
      _
    $region15: #{tpu_custom_call.1} parent=1 // pred_check_branch
      %26 = sbr.rel (0) target = $region17
    $region16: #{tpu_custom_call.1} parent=1 // pred_region
      _
    $region17: #{tpu_custom_call.1} parent=1 // pred_fallthru
      _
    // Predicated region
    $region18: #{tpu_custom_call.1} parent=1 // pred_check
      _
    $region19: #{tpu_custom_call.1} parent=1 // pred_check_branch
      %28 = sbr.rel (0) target = $region21
    $region20: #{tpu_custom_call.1} parent=1 // pred_region
      _
    $region21: #{tpu_custom_call.1} parent=1 // pred_fallthru
      _
    // Predicated region
    $region22: #{tpu_custom_call.1} parent=1 // pred_check
      _
    $region23: #{tpu_custom_call.1} parent=1 // pred_check_branch
      %30 = sbr.rel (0) target = $region25
    $region24: #{tpu_custom_call.1} parent=1 // pred_region
      _
    $region25: #{tpu_custom_call.1} parent=1 // pred_fallthru
      _
    // Predicated region
    $region26: #{tpu_custom_call.1} parent=1 // pred_check
      _
    $region27: #{tpu_custom_call.1} parent=1 // pred_check_branch
      %32 = sbr.rel (0) target = $region29
    $region28: #{tpu_custom_call.1} parent=1 // pred_region
      _
    $region29: #{tpu_custom_call.1} parent=1 // pred_fallthru
      _
    // Predicated region
    $region30: #{tpu_custom_call.1} parent=1 // pred_check
      _
    $region31: #{tpu_custom_call.1} parent=1 // pred_check_branch
      %34 = sbr.rel (0) target = $region33
    $region32: #{tpu_custom_call.1} parent=1 // pred_region
      _
    $region33: #{tpu_custom_call.1} parent=1 // pred_fallthru
      _
    // Predicated region
    $region34: #{tpu_custom_call.1} parent=1 // pred_check
      _
    $region35: #{tpu_custom_call.1} parent=1 // pred_check_branch
      %36 = sbr.rel (0) target = $region37
    $region36: #{tpu_custom_call.1} parent=1 // pred_region
      _
    $region37: #{tpu_custom_call.1} parent=1 // pred_fallthru
      _
    // Predicated region
    $region38: #{tpu_custom_call.1} parent=1 // pred_check
      _
    $region39: #{tpu_custom_call.1} parent=1 // pred_check_branch
      %38 = sbr.rel (0) target = $region41
    $region40: #{tpu_custom_call.1} parent=1 // pred_region
      _
    $region41: #{tpu_custom_call.1} parent=1 // pred_fallthru
      _
    %v39 = vld [vmem:[%s0] sm:$0xf]
    %v40 = vld [vmem:[%s1] sm:$0xff]
    %v41 = vld [vmem:[%s1 + $0x8] sm:$0xff]
    %v42 = vld [vmem:[%s1 + $0x10] sm:$0xff]
    %v43 = vld [vmem:[%s1 + $0x18] sm:$0xff]
    %v44 = vld [vmem:[%s2] sm:$0xff]
    %v45 = vld [vmem:[%s2 + $0x8] sm:$0xff]
    %v46 = vld [vmem:[%s2 + $0x10] sm:$0xff]
    %v47 = vld [vmem:[%s2 + $0x18] sm:$0xff]
    %v48 = vld [vmem:[%s3] sm:$0xff]
    %v49 = vld [vmem:[%s3 + $0x8] sm:$0xff]
    %v50 = vld [vmem:[%s3 + $0x10] sm:$0xff]
    %v51 = vld [vmem:[%s3 + $0x18] sm:$0xff]
    %v52 = vld [vmem:[%s4] sm:$0xff]
    %v53 = vld [vmem:[%s4 + $0x8] sm:$0xff]
    %v54 = vld [vmem:[%s4 + $0x10] sm:$0xff]
    %v55 = vld [vmem:[%s4 + $0x18] sm:$0xff]
    %v56 = vld [vmem:[%s5] sm:$0xff]
    %v57 = vld [vmem:[%s5 + $0x8] sm:$0xff]
    %v58 = vld [vmem:[%s5 + $0x10] sm:$0xff]
    %v59 = vld [vmem:[%s5 + $0x18] sm:$0xff]
    %v60 = vld [vmem:[%s6] sm:$0xff]
    %v61 = vld [vmem:[%s6 + $0x8] sm:$0xff]
    %v62 = vld [vmem:[%s6 + $0x10] sm:$0xff]
    %v63 = vld [vmem:[%s6 + $0x18] sm:$0xff]
    %65 = vset.pattern.permute.xlu0 0
    %66 = vperm.xlu0 %65, %v40
    %v67 = vpop.permute.xlu0 %66
    %70 = vset.pattern.permute.xlu0 0
    %71 = vperm.xlu0 %70, %v41
    %v72 = vpop.permute.xlu0 %71
    %75 = vset.pattern.permute.xlu0 0
    %76 = vperm.xlu0 %75, %v42
    %v77 = vpop.permute.xlu0 %76
    %80 = vset.pattern.permute.xlu0 0
    %81 = vperm.xlu0 %80, %v43
    %v82 = vpop.permute.xlu0 %81
    %v84 = vlaneseq
    %v85 = vshrl.u32 %v84, 7
    %v86 = vsub.s32 0, %v85
    %v87 = vrot.slane %v39, %v86
    %v88 = vmul.f32 %v67, %v87
    %v89 = vmul.f32 %v72, %v87
    %v90 = vmul.f32 %v77, %v87
    %v91 = vmul.f32 %v82, %v87
    %92 = vset.pattern.permute.xlu0 1
    %93 = vperm.xlu0 %92, %v40
    %v94 = vpop.permute.xlu0 %93
    %96 = vset.pattern.permute.xlu0 1
    %97 = vperm.xlu0 %96, %v41
    %v98 = vpop.permute.xlu0 %97
    %100 = vset.pattern.permute.xlu0 1
    %101 = vperm.xlu0 %100, %v42
    %v102 = vpop.permute.xlu0 %101
    %104 = vset.pattern.permute.xlu0 1
    %105 = vperm.xlu0 %104, %v43
    %v106 = vpop.permute.xlu0 %105
    %v108 = vlaneseq
    %v109 = vshrl.u32 %v108, 7
    %v110 = vsub.s32 1, %v109
    %v111 = vrot.slane %v39, %v110
    %v112 = vmul.f32 %v94, %v111
    %v113 = vmul.f32 %v98, %v111
    %v114 = vmul.f32 %v102, %v111
    %v115 = vmul.f32 %v106, %v111
    %v116 = vadd.f32 %v88, %v112
    %v117 = vadd.f32 %v89, %v113
    %v118 = vadd.f32 %v90, %v114
    %v119 = vadd.f32 %v91, %v115
    %120 = vset.pattern.permute.xlu0 2
    %121 = vperm.xlu0 %120, %v40
    %v122 = vpop.permute.xlu0 %121
    %124 = vset.pattern.permute.xlu0 2
    %125 = vperm.xlu0 %124, %v41
    %v126 = vpop.permute.xlu0 %125
    %128 = vset.pattern.permute.xlu0 2
    %129 = vperm.xlu0 %128, %v42
    %v130 = vpop.permute.xlu0 %129
    %132 = vset.pattern.permute.xlu0 2
    %133 = vperm.xlu0 %132, %v43
    %v134 = vpop.permute.xlu0 %133
    %v136 = vlaneseq
    %v137 = vshrl.u32 %v136, 7
    %v138 = vsub.s32 2, %v137
    %v139 = vrot.slane %v39, %v138
    %v140 = vmul.f32 %v122, %v139
    %v141 = vmul.f32 %v126, %v139
    %v142 = vmul.f32 %v130, %v139
    %v143 = vmul.f32 %v134, %v139
    %v144 = vadd.f32 %v116, %v140
    %v145 = vadd.f32 %v117, %v141
    %v146 = vadd.f32 %v118, %v142
    %v147 = vadd.f32 %v119, %v143
    %148 = vset.pattern.permute.xlu0 3
    %149 = vperm.xlu0 %148, %v40
    %v150 = vpop.permute.xlu0 %149
    %152 = vset.pattern.permute.xlu0 3
    %153 = vperm.xlu0 %152, %v41
    %v154 = vpop.permute.xlu0 %153
    %156 = vset.pattern.permute.xlu0 3
    %157 = vperm.xlu0 %156, %v42
    %v158 = vpop.permute.xlu0 %157
    %160 = vset.pattern.permute.xlu0 3
    %161 = vperm.xlu0 %160, %v43
    %v162 = vpop.permute.xlu0 %161
    %v164 = vlaneseq
    %v165 = vshrl.u32 %v164, 7
    %v166 = vsub.s32 3, %v165
    %v167 = vrot.slane %v39, %v166
    %v168 = vmul.f32 %v150, %v167
    %v169 = vmul.f32 %v154, %v167
    %v170 = vmul.f32 %v158, %v167
    %v171 = vmul.f32 %v162, %v167
    %v172 = vadd.f32 %v144, %v168
    %v173 = vadd.f32 %v145, %v169
    %v174 = vadd.f32 %v146, %v170
    %v175 = vadd.f32 %v147, %v171
    %177 = vset.pattern.permute.xlu0 0
    %178 = vperm.xlu0 %177, %v44
    %v179 = vpop.permute.xlu0 %178
    %182 = vset.pattern.permute.xlu0 0
    %183 = vperm.xlu0 %182, %v45
    %v184 = vpop.permute.xlu0 %183
    %187 = vset.pattern.permute.xlu0 0
    %188 = vperm.xlu0 %187, %v46
    %v189 = vpop.permute.xlu0 %188
    %192 = vset.pattern.permute.xlu0 0
    %193 = vperm.xlu0 %192, %v47
    %v194 = vpop.permute.xlu0 %193
    %v196 = vadd.f32 %v172, %v179
    %v197 = vadd.f32 %v173, %v184
    %v198 = vadd.f32 %v174, %v189
    %v199 = vadd.f32 %v175, %v194
    %201 = vset.pattern.permute.xlu0 0
    %202 = vperm.xlu0 %201, %v60
    %v203 = vpop.permute.xlu0 %202
    %206 = vset.pattern.permute.xlu0 0
    %207 = vperm.xlu0 %206, %v61
    %v208 = vpop.permute.xlu0 %207
    %211 = vset.pattern.permute.xlu0 0
    %212 = vperm.xlu0 %211, %v62
    %v213 = vpop.permute.xlu0 %212
    %216 = vset.pattern.permute.xlu0 0
    %217 = vperm.xlu0 %216, %v63
    %v218 = vpop.permute.xlu0 %217
    %vm220 = vcmask 261120
    %v222 = vsel %vm220, %v56, 0
    %v225 = vsel %vm220, %v57, 0
    %v228 = vsel %vm220, %v58, 0
    %v231 = vsel %vm220, %v59, 0
    %233 = vmatprep.subr.mxu0 0.0
    %234 = vmatpush1.msra.mxu0 %v196
    %235 = vmatprep.subr.mxu0 0.0
    %236 = vmatpush1.msra.mxu0 %v197
    %237 = vmatprep.subr.mxu0 0.0
    %238 = vmatpush1.msra.mxu0 %v198
    %239 = vmatprep.subr.mxu0 0.0
    %240 = vmatpush1.msra.mxu0 %v199
    %241 = vmatprep.subr.mxu0 0.0
    %242 = vmatpush1.msra.mxu0 0.0
    %243 = vmatprep.subr.mxu0 0.0
    %244 = vmatpush1.msra.mxu0 0.0
    %245 = vmatprep.subr.mxu0 0.0
    %246 = vmatpush1.msra.mxu0 0.0
    %247 = vmatprep.subr.mxu0 0.0
    %248 = vmatpush1.msra.mxu0 0.0
    %249 = vmatprep.subr.mxu0 0.0
    %250 = vmatpush1.msra.mxu0 0.0
    %251 = vmatprep.subr.mxu0 0.0
    %252 = vmatpush1.msra.mxu0 0.0
    %253 = vmatprep.subr.mxu0 0.0
    %254 = vmatpush1.msra.mxu0 0.0
    %255 = vmatprep.subr.mxu0 0.0
    %256 = vmatpush1.msra.mxu0 0.0
    %257 = vmatprep.subr.mxu0 0.0
    %258 = vmatpush1.msra.mxu0 0.0
    %259 = vmatprep.subr.mxu0 0.0
    %260 = vmatpush1.msra.mxu0 0.0
    %261 = vmatprep.subr.mxu0 0.0
    %262 = vmatpush1.msra.mxu0 0.0
    %263 = vmatprep.subr.mxu0 0.0
    %264 = vmatpush1.msra.mxu0 0.0
    %265 = vmatprep.subr.mxu0 0.0
    %266 = vmatpush1.msra.mxu0 0.0
    %267 = vmatprep.subr.mxu0 0.0
    %268 = vmatpush1.msra.mxu0 0.0
    %269 = vmatprep.subr.mxu0 0.0
    %270 = vmatpush1.msra.mxu0 0.0
    %271 = vmatprep.subr.mxu0 0.0
    %272 = vmatpush1.msra.mxu0 0.0
    %273 = vmatprep.subr.mxu0 0.0
    %274 = vmatpush1.msra.mxu0 0.0
    %275 = vmatprep.subr.mxu0 0.0
    %276 = vmatpush1.msra.mxu0 0.0
    %277 = vmatprep.subr.mxu0 0.0
    %278 = vmatpush1.msra.mxu0 0.0
    %279 = vmatprep.subr.mxu0 0.0
    %280 = vmatpush1.msra.mxu0 0.0
    %281 = vmatprep.subr.mxu0 0.0
    %282 = vmatpush1.msra.mxu0 0.0
    %283 = vmatprep.subr.mxu0 0.0
    %284 = vmatpush1.msra.mxu0 0.0
    %285 = vmatprep.subr.mxu0 0.0
    %286 = vmatpush1.msra.mxu0 0.0
    %287 = vmatprep.subr.mxu0 0.0
    %288 = vmatpush1.msra.mxu0 0.0
    %289 = vmatprep.subr.mxu0 0.0
    %290 = vmatpush1.msra.mxu0 0.0
    %291 = vmatprep.subr.mxu0 0.0
    %292 = vmatpush1.msra.mxu0 0.0
    %293 = vmatprep.subr.mxu0 0.0
    %294 = vmatpush1.msra.mxu0 0.0
    %295 = vmatprep.subr.mxu0 0.0
    %296 = vmatpush1.msra.mxu0 0.0
    %297 = vmatprep.mubr.f32.mxu0 0.0
    %298 = vmatmul.mubr.f32.gmra.mrb[0].mxu0 %v222
    %v299 = vpop.f32.mrb[0].mxu0
    %v300 = vadd.f32 %v203, %v299
    %v301 = vpop.f32.mrb[0].mxu0
    %302 = vmatprep.mubr.f32.mxu0 0.0
    %303 = vmatmul.mubr.f32.gmra.mrb[0].mxu0 %v225
    %v304 = vpop.f32.mrb[0].mxu0
    %v305 = vadd.f32 %v208, %v304
    %v306 = vpop.f32.mrb[0].mxu0
    %307 = vmatprep.mubr.f32.mxu0 0.0
    %308 = vmatmul.mubr.f32.gmra.mrb[0].mxu0 %v228
    %v309 = vpop.f32.mrb[0].mxu0
    %v310 = vadd.f32 %v213, %v309
    %v311 = vpop.f32.mrb[0].mxu0
    %312 = vmatprep.mubr.f32.mxu0 0.0
    %313 = vmatmul.mubr.f32.gmra.mrb[0].mxu0 %v231
    %v314 = vpop.f32.mrb[0].mxu0
    %v315 = vadd.f32 %v218, %v314
    %v316 = vpop.f32.mrb[0].mxu0
    %317 = vdwg.mxu0
    %v318 = vtanh.pop %v300
    %v319 = vtanh.pop %v305
    %v320 = vtanh.pop %v310
    %v321 = vtanh.pop %v315
    %323 = vset.pattern.permute.xlu0 0
    %324 = vperm.xlu0 %323, %v52
    %v325 = vpop.permute.xlu0 %324
    %328 = vset.pattern.permute.xlu0 0
    %329 = vperm.xlu0 %328, %v53
    %v330 = vpop.permute.xlu0 %329
    %333 = vset.pattern.permute.xlu0 0
    %334 = vperm.xlu0 %333, %v54
    %v335 = vpop.permute.xlu0 %334
    %338 = vset.pattern.permute.xlu0 0
    %339 = vperm.xlu0 %338, %v55
    %v340 = vpop.permute.xlu0 %339
    %v343 = vsel %vm220, %v48, 0
    %v346 = vsel %vm220, %v49, 0
    %v349 = vsel %vm220, %v50, 0
    %v352 = vsel %vm220, %v51, 0
    %354 = vmatprep.subr.mxu0 0.0
    %355 = vmatpush1.msra.mxu0 %v318
    %356 = vmatprep.subr.mxu0 0.0
    %357 = vmatpush1.msra.mxu0 %v319
    %358 = vmatprep.subr.mxu0 0.0
    %359 = vmatpush1.msra.mxu0 %v320
    %360 = vmatprep.subr.mxu0 0.0
    %361 = vmatpush1.msra.mxu0 %v321
    %362 = vmatprep.subr.mxu0 0.0
    %363 = vmatpush1.msra.mxu0 0.0
    %364 = vmatprep.subr.mxu0 0.0
    %365 = vmatpush1.msra.mxu0 0.0
    %366 = vmatprep.subr.mxu0 0.0
    %367 = vmatpush1.msra.mxu0 0.0
    %368 = vmatprep.subr.mxu0 0.0
    %369 = vmatpush1.msra.mxu0 0.0
    %370 = vmatprep.subr.mxu0 0.0
    %371 = vmatpush1.msra.mxu0 0.0
    %372 = vmatprep.subr.mxu0 0.0
    %373 = vmatpush1.msra.mxu0 0.0
    %374 = vmatprep.subr.mxu0 0.0
    %375 = vmatpush1.msra.mxu0 0.0
    %376 = vmatprep.subr.mxu0 0.0
    %377 = vmatpush1.msra.mxu0 0.0
    %378 = vmatprep.subr.mxu0 0.0
    %379 = vmatpush1.msra.mxu0 0.0
    %380 = vmatprep.subr.mxu0 0.0
    %381 = vmatpush1.msra.mxu0 0.0
    %382 = vmatprep.subr.mxu0 0.0
    %383 = vmatpush1.msra.mxu0 0.0
    %384 = vmatprep.subr.mxu0 0.0
    %385 = vmatpush1.msra.mxu0 0.0
    %386 = vmatprep.subr.mxu0 0.0
    %387 = vmatpush1.msra.mxu0 0.0
    %388 = vmatprep.subr.mxu0 0.0
    %389 = vmatpush1.msra.mxu0 0.0
    %390 = vmatprep.subr.mxu0 0.0
    %391 = vmatpush1.msra.mxu0 0.0
    %392 = vmatprep.subr.mxu0 0.0
    %393 = vmatpush1.msra.mxu0 0.0
    %394 = vmatprep.subr.mxu0 0.0
    %395 = vmatpush1.msra.mxu0 0.0
    %396 = vmatprep.subr.mxu0 0.0
    %397 = vmatpush1.msra.mxu0 0.0
    %398 = vmatprep.subr.mxu0 0.0
    %399 = vmatpush1.msra.mxu0 0.0
    %400 = vmatprep.subr.mxu0 0.0
    %401 = vmatpush1.msra.mxu0 0.0
    %402 = vmatprep.subr.mxu0 0.0
    %403 = vmatpush1.msra.mxu0 0.0
    %404 = vmatprep.subr.mxu0 0.0
    %405 = vmatpush1.msra.mxu0 0.0
    %406 = vmatprep.subr.mxu0 0.0
    %407 = vmatpush1.msra.mxu0 0.0
    %408 = vmatprep.subr.mxu0 0.0
    %409 = vmatpush1.msra.mxu0 0.0
    %410 = vmatprep.subr.mxu0 0.0
    %411 = vmatpush1.msra.mxu0 0.0
    %412 = vmatprep.subr.mxu0 0.0
    %413 = vmatpush1.msra.mxu0 0.0
    %414 = vmatprep.subr.mxu0 0.0
    %415 = vmatpush1.msra.mxu0 0.0
    %416 = vmatprep.subr.mxu0 0.0
    %417 = vmatpush1.msra.mxu0 0.0
    %418 = vmatprep.mubr.f32.mxu0 0.0
    %419 = vmatmul.mubr.f32.gmra.mrb[0].mxu0 %v343
    %v420 = vpop.f32.mrb[0].mxu0
    %v421 = vadd.f32 %v325, %v420
    %v422 = vpop.f32.mrb[0].mxu0
    %423 = vmatprep.mubr.f32.mxu0 0.0
    %424 = vmatmul.mubr.f32.gmra.mrb[0].mxu0 %v346
    %v425 = vpop.f32.mrb[0].mxu0
    %v426 = vadd.f32 %v330, %v425
    %v427 = vpop.f32.mrb[0].mxu0
    %428 = vmatprep.mubr.f32.mxu0 0.0
    %429 = vmatmul.mubr.f32.gmra.mrb[0].mxu0 %v349
    %v430 = vpop.f32.mrb[0].mxu0
    %v431 = vadd.f32 %v335, %v430
    %v432 = vpop.f32.mrb[0].mxu0
    %433 = vmatprep.mubr.f32.mxu0 0.0
    %434 = vmatmul.mubr.f32.gmra.mrb[0].mxu0 %v352
    %v435 = vpop.f32.mrb[0].mxu0
    %v436 = vadd.f32 %v340, %v435
    %v437 = vpop.f32.mrb[0].mxu0
    %438 = vdwg.mxu0
    %v439 = vtanh.pop %v421
    %v440 = vtanh.pop %v426
    %v441 = vtanh.pop %v431
    %v442 = vtanh.pop %v436
    %v443 = vadd.f32 %v439, %v196
    %v444 = vadd.f32 %v440, %v197
    %v445 = vadd.f32 %v441, %v198
    %v446 = vadd.f32 %v442, %v199
    %447 = vmatprep.subr.mxu0 0.0
    %448 = vmatpush1.msra.mxu0 %v443
    %449 = vmatprep.subr.mxu0 0.0
    %450 = vmatpush1.msra.mxu0 %v444
    %451 = vmatprep.subr.mxu0 0.0
    %452 = vmatpush1.msra.mxu0 %v445
    %453 = vmatprep.subr.mxu0 0.0
    %454 = vmatpush1.msra.mxu0 %v446
    %455 = vmatprep.subr.mxu0 0.0
    %456 = vmatpush1.msra.mxu0 0.0
    %457 = vmatprep.subr.mxu0 0.0
    %458 = vmatpush1.msra.mxu0 0.0
    %459 = vmatprep.subr.mxu0 0.0
    %460 = vmatpush1.msra.mxu0 0.0
    %461 = vmatprep.subr.mxu0 0.0
    %462 = vmatpush1.msra.mxu0 0.0
    %463 = vmatprep.subr.mxu0 0.0
    %464 = vmatpush1.msra.mxu0 0.0
    %465 = vmatprep.subr.mxu0 0.0
    %466 = vmatpush1.msra.mxu0 0.0
    %467 = vmatprep.subr.mxu0 0.0
    %468 = vmatpush1.msra.mxu0 0.0
    %469 = vmatprep.subr.mxu0 0.0
    %470 = vmatpush1.msra.mxu0 0.0
    %471 = vmatprep.subr.mxu0 0.0
    %472 = vmatpush1.msra.mxu0 0.0
    %473 = vmatprep.subr.mxu0 0.0
    %474 = vmatpush1.msra.mxu0 0.0
    %475 = vmatprep.subr.mxu0 0.0
    %476 = vmatpush1.msra.mxu0 0.0
    %477 = vmatprep.subr.mxu0 0.0
    %478 = vmatpush1.msra.mxu0 0.0
    %479 = vmatprep.subr.mxu0 0.0
    %480 = vmatpush1.msra.mxu0 0.0
    %481 = vmatprep.subr.mxu0 0.0
    %482 = vmatpush1.msra.mxu0 0.0
    %483 = vmatprep.subr.mxu0 0.0
    %484 = vmatpush1.msra.mxu0 0.0
    %485 = vmatprep.subr.mxu0 0.0
    %486 = vmatpush1.msra.mxu0 0.0
    %487 = vmatprep.subr.mxu0 0.0
    %488 = vmatpush1.msra.mxu0 0.0
    %489 = vmatprep.subr.mxu0 0.0
    %490 = vmatpush1.msra.mxu0 0.0
    %491 = vmatprep.subr.mxu0 0.0
    %492 = vmatpush1.msra.mxu0 0.0
    %493 = vmatprep.subr.mxu0 0.0
    %494 = vmatpush1.msra.mxu0 0.0
    %495 = vmatprep.subr.mxu0 0.0
    %496 = vmatpush1.msra.mxu0 0.0
    %497 = vmatprep.subr.mxu0 0.0
    %498 = vmatpush1.msra.mxu0 0.0
    %499 = vmatprep.subr.mxu0 0.0
    %500 = vmatpush1.msra.mxu0 0.0
    %501 = vmatprep.subr.mxu0 0.0
    %502 = vmatpush1.msra.mxu0 0.0
    %503 = vmatprep.subr.mxu0 0.0
    %504 = vmatpush1.msra.mxu0 0.0
    %505 = vmatprep.subr.mxu0 0.0
    %506 = vmatpush1.msra.mxu0 0.0
    %507 = vmatprep.subr.mxu0 0.0
    %508 = vmatpush1.msra.mxu0 0.0
    %509 = vmatprep.subr.mxu0 0.0
    %510 = vmatpush1.msra.mxu0 0.0
    %511 = vmatprep.mubr.f32.mxu0 0.0
    %512 = vmatmul.mubr.f32.gmra.mrb[0].mxu0 %v222
    %v513 = vpop.f32.mrb[0].mxu0
    %v514 = vadd.f32 %v203, %v513
    %v515 = vpop.f32.mrb[0].mxu0
    %516 = vmatprep.mubr.f32.mxu0 0.0
    %517 = vmatmul.mubr.f32.gmra.mrb[0].mxu0 %v225
    %v518 = vpop.f32.mrb[0].mxu0
    %v519 = vadd.f32 %v208, %v518
    %v520 = vpop.f32.mrb[0].mxu0
    %521 = vmatprep.mubr.f32.mxu0 0.0
    %522 = vmatmul.mubr.f32.gmra.mrb[0].mxu0 %v228
    %v523 = vpop.f32.mrb[0].mxu0
    %v524 = vadd.f32 %v213, %v523
    %v525 = vpop.f32.mrb[0].mxu0
    %526 = vmatprep.mubr.f32.mxu0 0.0
    %527 = vmatmul.mubr.f32.gmra.mrb[0].mxu0 %v231
    %v528 = vpop.f32.mrb[0].mxu0
    %v529 = vadd.f32 %v218, %v528
    %v530 = vpop.f32.mrb[0].mxu0
    %531 = vdwg.mxu0
    %v532 = vtanh.pop %v514
    %v533 = vtanh.pop %v519
    %v534 = vtanh.pop %v524
    %v535 = vtanh.pop %v529
    %536 = vmatprep.subr.mxu0 0.0
    %537 = vmatpush1.msra.mxu0 %v532
    %538 = vmatprep.subr.mxu0 0.0
    %539 = vmatpush1.msra.mxu0 %v533
    %540 = vmatprep.subr.mxu0 0.0
    %541 = vmatpush1.msra.mxu0 %v534
    %542 = vmatprep.subr.mxu0 0.0
    %543 = vmatpush1.msra.mxu0 %v535
    %544 = vmatprep.subr.mxu0 0.0
    %545 = vmatpush1.msra.mxu0 0.0
    %546 = vmatprep.subr.mxu0 0.0
    %547 = vmatpush1.msra.mxu0 0.0
    %548 = vmatprep.subr.mxu0 0.0
    %549 = vmatpush1.msra.mxu0 0.0
    %550 = vmatprep.subr.mxu0 0.0
    %551 = vmatpush1.msra.mxu0 0.0
    %552 = vmatprep.subr.mxu0 0.0
    %553 = vmatpush1.msra.mxu0 0.0
    %554 = vmatprep.subr.mxu0 0.0
    %555 = vmatpush1.msra.mxu0 0.0
    %556 = vmatprep.subr.mxu0 0.0
    %557 = vmatpush1.msra.mxu0 0.0
    %558 = vmatprep.subr.mxu0 0.0
    %559 = vmatpush1.msra.mxu0 0.0
    %560 = vmatprep.subr.mxu0 0.0
    %561 = vmatpush1.msra.mxu0 0.0
    %562 = vmatprep.subr.mxu0 0.0
    %563 = vmatpush1.msra.mxu0 0.0
    %564 = vmatprep.subr.mxu0 0.0
    %565 = vmatpush1.msra.mxu0 0.0
    %566 = vmatprep.subr.mxu0 0.0
    %567 = vmatpush1.msra.mxu0 0.0
    %568 = vmatprep.subr.mxu0 0.0
    %569 = vmatpush1.msra.mxu0 0.0
    %570 = vmatprep.subr.mxu0 0.0
    %571 = vmatpush1.msra.mxu0 0.0
    %572 = vmatprep.subr.mxu0 0.0
    %573 = vmatpush1.msra.mxu0 0.0
    %574 = vmatprep.subr.mxu0 0.0
    %575 = vmatpush1.msra.mxu0 0.0
    %576 = vmatprep.subr.mxu0 0.0
    %577 = vmatpush1.msra.mxu0 0.0
    %578 = vmatprep.subr.mxu0 0.0
    %579 = vmatpush1.msra.mxu0 0.0
    %580 = vmatprep.subr.mxu0 0.0
    %581 = vmatpush1.msra.mxu0 0.0
    %582 = vmatprep.subr.mxu0 0.0
    %583 = vmatpush1.msra.mxu0 0.0
    %584 = vmatprep.subr.mxu0 0.0
    %585 = vmatpush1.msra.mxu0 0.0
    %586 = vmatprep.subr.mxu0 0.0
    %587 = vmatpush1.msra.mxu0 0.0
    %588 = vmatprep.subr.mxu0 0.0
    %589 = vmatpush1.msra.mxu0 0.0
    %590 = vmatprep.subr.mxu0 0.0
    %591 = vmatpush1.msra.mxu0 0.0
    %592 = vmatprep.subr.mxu0 0.0
    %593 = vmatpush1.msra.mxu0 0.0
    %594 = vmatprep.subr.mxu0 0.0
    %595 = vmatpush1.msra.mxu0 0.0
    %596 = vmatprep.subr.mxu0 0.0
    %597 = vmatpush1.msra.mxu0 0.0
    %598 = vmatprep.subr.mxu0 0.0
    %599 = vmatpush1.msra.mxu0 0.0
    %600 = vmatprep.mubr.f32.mxu0 0.0
    %601 = vmatmul.mubr.f32.gmra.mrb[0].mxu0 %v343
    %v602 = vpop.f32.mrb[0].mxu0
    %v603 = vadd.f32 %v325, %v602
    %v604 = vpop.f32.mrb[0].mxu0
    %605 = vmatprep.mubr.f32.mxu0 0.0
    %606 = vmatmul.mubr.f32.gmra.mrb[0].mxu0 %v346
    %v607 = vpop.f32.mrb[0].mxu0
    %v608 = vadd.f32 %v330, %v607
    %v609 = vpop.f32.mrb[0].mxu0
    %610 = vmatprep.mubr.f32.mxu0 0.0
    %611 = vmatmul.mubr.f32.gmra.mrb[0].mxu0 %v349
    %v612 = vpop.f32.mrb[0].mxu0
    %v613 = vadd.f32 %v335, %v612
    %v614 = vpop.f32.mrb[0].mxu0
    %615 = vmatprep.mubr.f32.mxu0 0.0
    %616 = vmatmul.mubr.f32.gmra.mrb[0].mxu0 %v352
    %v617 = vpop.f32.mrb[0].mxu0
    %v618 = vadd.f32 %v340, %v617
    %v619 = vpop.f32.mrb[0].mxu0
    %620 = vdwg.mxu0
    %v621 = vtanh.pop %v603
    %v622 = vtanh.pop %v608
    %v623 = vtanh.pop %v613
    %v624 = vtanh.pop %v618
    %v625 = vadd.f32 %v621, %v443
    %v626 = vadd.f32 %v622, %v444
    %v627 = vadd.f32 %v623, %v445
    %v628 = vadd.f32 %v624, %v446
    %629 = vmatprep.subr.mxu0 0.0
    %630 = vmatpush1.msra.mxu0 %v625
    %631 = vmatprep.subr.mxu0 0.0
    %632 = vmatpush1.msra.mxu0 %v626
    %633 = vmatprep.subr.mxu0 0.0
    %634 = vmatpush1.msra.mxu0 %v627
    %635 = vmatprep.subr.mxu0 0.0
    %636 = vmatpush1.msra.mxu0 %v628
    %637 = vmatprep.subr.mxu0 0.0
    %638 = vmatpush1.msra.mxu0 0.0
    %639 = vmatprep.subr.mxu0 0.0
    %640 = vmatpush1.msra.mxu0 0.0
    %641 = vmatprep.subr.mxu0 0.0
    %642 = vmatpush1.msra.mxu0 0.0
    %643 = vmatprep.subr.mxu0 0.0
    %644 = vmatpush1.msra.mxu0 0.0
    %645 = vmatprep.subr.mxu0 0.0
    %646 = vmatpush1.msra.mxu0 0.0
    %647 = vmatprep.subr.mxu0 0.0
    %648 = vmatpush1.msra.mxu0 0.0
    %649 = vmatprep.subr.mxu0 0.0
    %650 = vmatpush1.msra.mxu0 0.0
    %651 = vmatprep.subr.mxu0 0.0
    %652 = vmatpush1.msra.mxu0 0.0
    %653 = vmatprep.subr.mxu0 0.0
    %654 = vmatpush1.msra.mxu0 0.0
    %655 = vmatprep.subr.mxu0 0.0
    %656 = vmatpush1.msra.mxu0 0.0
    %657 = vmatprep.subr.mxu0 0.0
    %658 = vmatpush1.msra.mxu0 0.0
    %659 = vmatprep.subr.mxu0 0.0
    %660 = vmatpush1.msra.mxu0 0.0
    %661 = vmatprep.subr.mxu0 0.0
    %662 = vmatpush1.msra.mxu0 0.0
    %663 = vmatprep.subr.mxu0 0.0
    %664 = vmatpush1.msra.mxu0 0.0
    %665 = vmatprep.subr.mxu0 0.0
    %666 = vmatpush1.msra.mxu0 0.0
    %667 = vmatprep.subr.mxu0 0.0
    %668 = vmatpush1.msra.mxu0 0.0
    %669 = vmatprep.subr.mxu0 0.0
    %670 = vmatpush1.msra.mxu0 0.0
    %671 = vmatprep.subr.mxu0 0.0
    %672 = vmatpush1.msra.mxu0 0.0
    %673 = vmatprep.subr.mxu0 0.0
    %674 = vmatpush1.msra.mxu0 0.0
    %675 = vmatprep.subr.mxu0 0.0
    %676 = vmatpush1.msra.mxu0 0.0
    %677 = vmatprep.subr.mxu0 0.0
    %678 = vmatpush1.msra.mxu0 0.0
    %679 = vmatprep.subr.mxu0 0.0
    %680 = vmatpush1.msra.mxu0 0.0
    %681 = vmatprep.subr.mxu0 0.0
    %682 = vmatpush1.msra.mxu0 0.0
    %683 = vmatprep.subr.mxu0 0.0
    %684 = vmatpush1.msra.mxu0 0.0
    %685 = vmatprep.subr.mxu0 0.0
    %686 = vmatpush1.msra.mxu0 0.0
    %687 = vmatprep.subr.mxu0 0.0
    %688 = vmatpush1.msra.mxu0 0.0
    %689 = vmatprep.subr.mxu0 0.0
    %690 = vmatpush1.msra.mxu0 0.0
    %691 = vmatprep.subr.mxu0 0.0
    %692 = vmatpush1.msra.mxu0 0.0
    %693 = vmatprep.mubr.f32.mxu0 0.0
    %694 = vmatmul.mubr.f32.gmra.mrb[0].mxu0 %v222
    %v695 = vpop.f32.mrb[0].mxu0
    %v696 = vadd.f32 %v203, %v695
    %v697 = vpop.f32.mrb[0].mxu0
    %698 = vmatprep.mubr.f32.mxu0 0.0
    %699 = vmatmul.mubr.f32.gmra.mrb[0].mxu0 %v225
    %v700 = vpop.f32.mrb[0].mxu0
    %v701 = vadd.f32 %v208, %v700
    %v702 = vpop.f32.mrb[0].mxu0
    %703 = vmatprep.mubr.f32.mxu0 0.0
    %704 = vmatmul.mubr.f32.gmra.mrb[0].mxu0 %v228
    %v705 = vpop.f32.mrb[0].mxu0
    %v706 = vadd.f32 %v213, %v705
    %v707 = vpop.f32.mrb[0].mxu0
    %708 = vmatprep.mubr.f32.mxu0 0.0
    %709 = vmatmul.mubr.f32.gmra.mrb[0].mxu0 %v231
    %v710 = vpop.f32.mrb[0].mxu0
    %v711 = vadd.f32 %v218, %v710
    %v712 = vpop.f32.mrb[0].mxu0
    %713 = vdwg.mxu0
    %v714 = vtanh.pop %v696
    %v715 = vtanh.pop %v701
    %v716 = vtanh.pop %v706
    %v717 = vtanh.pop %v711
    %718 = vmatprep.subr.mxu0 0.0
    %719 = vmatpush1.msra.mxu0 %v714
    %720 = vmatprep.subr.mxu0 0.0
    %721 = vmatpush1.msra.mxu0 %v715
    %722 = vmatprep.subr.mxu0 0.0
    %723 = vmatpush1.msra.mxu0 %v716
    %724 = vmatprep.subr.mxu0 0.0
    %725 = vmatpush1.msra.mxu0 %v717
    %726 = vmatprep.subr.mxu0 0.0
    %727 = vmatpush1.msra.mxu0 0.0
    %728 = vmatprep.subr.mxu0 0.0
    %729 = vmatpush1.msra.mxu0 0.0
    %730 = vmatprep.subr.mxu0 0.0
    %731 = vmatpush1.msra.mxu0 0.0
    %732 = vmatprep.subr.mxu0 0.0
    %733 = vmatpush1.msra.mxu0 0.0
    %734 = vmatprep.subr.mxu0 0.0
    %735 = vmatpush1.msra.mxu0 0.0
    %736 = vmatprep.subr.mxu0 0.0
    %737 = vmatpush1.msra.mxu0 0.0
    %738 = vmatprep.subr.mxu0 0.0
    %739 = vmatpush1.msra.mxu0 0.0
    %740 = vmatprep.subr.mxu0 0.0
    %741 = vmatpush1.msra.mxu0 0.0
    %742 = vmatprep.subr.mxu0 0.0
    %743 = vmatpush1.msra.mxu0 0.0
    %744 = vmatprep.subr.mxu0 0.0
    %745 = vmatpush1.msra.mxu0 0.0
    %746 = vmatprep.subr.mxu0 0.0
    %747 = vmatpush1.msra.mxu0 0.0
    %748 = vmatprep.subr.mxu0 0.0
    %749 = vmatpush1.msra.mxu0 0.0
    %750 = vmatprep.subr.mxu0 0.0
    %751 = vmatpush1.msra.mxu0 0.0
    %752 = vmatprep.subr.mxu0 0.0
    %753 = vmatpush1.msra.mxu0 0.0
    %754 = vmatprep.subr.mxu0 0.0
    %755 = vmatpush1.msra.mxu0 0.0
    %756 = vmatprep.subr.mxu0 0.0
    %757 = vmatpush1.msra.mxu0 0.0
    %758 = vmatprep.subr.mxu0 0.0
    %759 = vmatpush1.msra.mxu0 0.0
    %760 = vmatprep.subr.mxu0 0.0
    %761 = vmatpush1.msra.mxu0 0.0
    %762 = vmatprep.subr.mxu0 0.0
    %763 = vmatpush1.msra.mxu0 0.0
    %764 = vmatprep.subr.mxu0 0.0
    %765 = vmatpush1.msra.mxu0 0.0
    %766 = vmatprep.subr.mxu0 0.0
    %767 = vmatpush1.msra.mxu0 0.0
    %768 = vmatprep.subr.mxu0 0.0
    %769 = vmatpush1.msra.mxu0 0.0
    %770 = vmatprep.subr.mxu0 0.0
    %771 = vmatpush1.msra.mxu0 0.0
    %772 = vmatprep.subr.mxu0 0.0
    %773 = vmatpush1.msra.mxu0 0.0
    %774 = vmatprep.subr.mxu0 0.0
    %775 = vmatpush1.msra.mxu0 0.0
    %776 = vmatprep.subr.mxu0 0.0
    %777 = vmatpush1.msra.mxu0 0.0
    %778 = vmatprep.subr.mxu0 0.0
    %779 = vmatpush1.msra.mxu0 0.0
    %780 = vmatprep.subr.mxu0 0.0
    %781 = vmatpush1.msra.mxu0 0.0
    %782 = vmatprep.mubr.f32.mxu0 0.0
    %783 = vmatmul.mubr.f32.gmra.mrb[0].mxu0 %v343
    %v784 = vpop.f32.mrb[0].mxu0
    %v785 = vadd.f32 %v325, %v784
    %v786 = vpop.f32.mrb[0].mxu0
    %787 = vmatprep.mubr.f32.mxu0 0.0
    %788 = vmatmul.mubr.f32.gmra.mrb[0].mxu0 %v346
    %v789 = vpop.f32.mrb[0].mxu0
    %v790 = vadd.f32 %v330, %v789
    %v791 = vpop.f32.mrb[0].mxu0
    %792 = vmatprep.mubr.f32.mxu0 0.0
    %793 = vmatmul.mubr.f32.gmra.mrb[0].mxu0 %v349
    %v794 = vpop.f32.mrb[0].mxu0
    %v795 = vadd.f32 %v335, %v794
    %v796 = vpop.f32.mrb[0].mxu0
    %797 = vmatprep.mubr.f32.mxu0 0.0
    %798 = vmatmul.mubr.f32.gmra.mrb[0].mxu0 %v352
    %v799 = vpop.f32.mrb[0].mxu0
    %v800 = vadd.f32 %v340, %v799
    %v801 = vpop.f32.mrb[0].mxu0
    %802 = vdwg.mxu0
    %v803 = vtanh.pop %v785
    %v804 = vtanh.pop %v790
    %v805 = vtanh.pop %v795
    %v806 = vtanh.pop %v800
    %v807 = vadd.f32 %v803, %v625
    %v808 = vadd.f32 %v804, %v626
    %v809 = vadd.f32 %v805, %v627
    %v810 = vadd.f32 %v806, %v628
    %v811 = vld [vmem:[%s7] sm:$0xff]
    %v812 = vld [vmem:[%s7 + $0x8] sm:$0xff]
    %v813 = vld [vmem:[%s7 + $0x10] sm:$0xff]
    %v814 = vld [vmem:[%s7 + $0x18] sm:$0xff]
    %v815 = vld [vmem:[#allocation2] sm:$0x1]
    %817 = vset.pattern.permute.xlu0 0
    %818 = vperm.xlu0 %817, %v811
    %v819 = vpop.permute.xlu0 %818
    %822 = vset.pattern.permute.xlu0 0
    %823 = vperm.xlu0 %822, %v812
    %v824 = vpop.permute.xlu0 %823
    %827 = vset.pattern.permute.xlu0 0
    %828 = vperm.xlu0 %827, %v813
    %v829 = vpop.permute.xlu0 %828
    %832 = vset.pattern.permute.xlu0 0
    %833 = vperm.xlu0 %832, %v814
    %v834 = vpop.permute.xlu0 %833
    %v836 = vmul.f32 %v807, %v819
    %v837 = vmul.f32 %v808, %v824
    %v838 = vmul.f32 %v809, %v829
    %v839 = vmul.f32 %v810, %v834
    %v840 = vadd.f32 %v836, %v837
    %v841 = vadd.f32 %v840, %v838
    %v842 = vadd.f32 %v841, %v839
    %v843 = vrot.slane %v842, 4
    %v844 = vadd.f32 %v842, %v843
    %v845 = vrot.slane %v844, 2
    %v846 = vadd.f32 %v844, %v845
    %v847 = vrot.slane %v846, 1
    %v848 = vadd.f32 %v846, %v847
    %850 = vset.pattern.permute.xlu0 0
    %851 = vperm.xlu0 %850, %v815
    %v852 = vpop.permute.xlu0 %851
    %v854 = vlaneseq
    %v855 = vshrl.u32 %v854, 7
    %v856 = vsub.s32 0, %v855
    %v857 = vrot.slane %v852, %v856
    %v858 = vadd.f32 %v848, %v857
    %v859 = vtanh.pop %v858
    %s860 = sld [smem:[#allocation3]]
    %v861 = vstv %s860
    %v862 = vmul.f32 %v859, %v861
    %863 = vst [vmem:[#allocation4] sm:$0x1] %v862
    // Predicated region
    $region42: #{tpu_custom_call.1} parent=1 // pred_check
      _
    $region43: #{tpu_custom_call.1} parent=1 // pred_check_branch
      %865 = sbr.rel (0) target = $region45
    $region44: #{tpu_custom_call.1} parent=1 // pred_region
      %s867 = ssub.s32 16, 16
      %868 = vsyncadd [#allocation5], %s867
      %s870 = sshll.u32 [#allocation4], 4
      %s871 = int_to_ptr.vmem [resolvable:$true] %s870
      %873 = dma.vmem_to_hbm [thread:$0]  %s871, 16, %s10, [#allocation5]
    $region45: #{tpu_custom_call.1} parent=1 // pred_fallthru
      _
    // Predicated region
    $region46: #{tpu_custom_call.1} parent=1 // pred_check
      _
    $region47: #{tpu_custom_call.1} parent=1 // pred_check_branch
      %875 = sbr.rel (0) target = $region49
    $region48: #{tpu_custom_call.1} parent=1 // pred_region
      %876 = dma.done [#allocation5], 16
    $region49: #{tpu_custom_call.1} parent=1 // pred_fallthru
      _
    %877 = vsyncpa [#allocation5], 1

</llo_original>
